<compile_context>
chip_gen: v7x
topology: tpu7x:2x2x1
jax: 0.10.0
libtpu: 0.0.40
codegen_flags: <defaults>
</compile_context>

<pallas_src>
import functools

import jax
import jax.numpy as jnp
from jax import lax
from jax.experimental import pallas as pl
from jax.experimental.pallas import tpu as pltpu


# ---------------------------------------------------------------------------
# Kernels
# ---------------------------------------------------------------------------
def _se_kernel_flat(x_ref, et_ref, w1t_ref, b1_ref, w2t_ref, b2_ref, o_ref,
                    *, inv_len):
    """Lane-dense path.

    x_ref/o_ref: (Bt, C*L)   flattened NCL rows
    et_ref:      (C*L, C)    0/1 channel indicator (Et[c*L + l, c] = 1)
    w1t_ref:     (C, bneck)  conv_1 weight, transposed
    b1_ref:      (1, bneck)
    w2t_ref:     (bneck, C)  conv_2 weight, transposed
    b2_ref:      (1, C)
    """
    # AdaptiveAvgPool1d(1): pooled[b, c] = (1/L) * sum_l x[b, c*L + l]
    pooled = jnp.dot(x_ref[...], et_ref[...],
                     preferred_element_type=jnp.float32) * inv_len      # (Bt, C)

    # conv_1 (1x1) + ReLU
    y1 = jnp.dot(pooled, w1t_ref[...],
                 preferred_element_type=jnp.float32) + b1_ref[...]      # (Bt, bneck)
    y1 = jnp.maximum(y1, 0.0)

    # conv_2 (1x1) + sigmoid, computed at (Bt, C)  -> EUP work is L x smaller.
    y2 = jnp.dot(y1, w2t_ref[...],
                 preferred_element_type=jnp.float32) + b2_ref[...]      # (Bt, C)
    gate = jax.nn.sigmoid(y2)                                           # (Bt, C)

    # Broadcast the gate over L lane-densely: gate @ Et^T (contract channel dims),
    # reusing the same Et operand with a transposed contraction (no materialized T).
    gate_full = lax.dot_general(
        gate.astype(et_ref.dtype), et_ref[...],
        dimension_numbers=(((1,), (1,)), ((), ())),
        preferred_element_type=jnp.float32)                             # (Bt, C*L)

    # Re-read x only here (no f32 copy held live across the matmuls above).
    o_ref[...] = (x_ref[...] * gate_full.astype(x_ref.dtype)).astype(o_ref.dtype)


def _se_kernel_3d(x_ref, w1t_ref, b1_ref, w2t_ref, b2_ref, o_ref):
    """3-D path (L already a multiple of 128 -> lane-dense).  x_ref/o_ref: (Bt, C, L)."""
    pooled = jnp.mean(x_ref[...], axis=2, dtype=jnp.float32)            # (Bt, C)

    y1 = jnp.dot(pooled, w1t_ref[...],
                 preferred_element_type=jnp.float32) + b1_ref[...]      # (Bt, bneck)
    y1 = jnp.maximum(y1, 0.0)
    y2 = jnp.dot(y1, w2t_ref[...],
                 preferred_element_type=jnp.float32) + b2_ref[...]      # (Bt, C)
    gate = jax.nn.sigmoid(y2)                                           # (Bt, C)

    o_ref[...] = (x_ref[...] * gate[:, :, None].astype(x_ref.dtype)).astype(o_ref.dtype)


# ---------------------------------------------------------------------------
# Sizing helpers
# ---------------------------------------------------------------------------
_DEF_VMEM_CAP = 64 * 1024 * 1024      # conservative fallback (v7x per-TensorCore)


def _round_up(x, m):
    return ((x + m - 1) // m) * m


def _sublane(dtype):
    # packed sublane tile: 8 for 4-byte, 16 for 2-byte, 32 for 1-byte dtypes
    return max(8, 32 // max(jnp.dtype(dtype).itemsize, 1))


def _vmem_capacity_bytes():
    try:
        info = pltpu.get_tpu_info()
        for name in ("vmem_capacity_bytes", "vmem_bytes", "vmem_size_bytes"):
            cap = getattr(info, name, None)
            if cap:
                return int(cap)
    except Exception:
        pass
    return _DEF_VMEM_CAP


def _vmem_budgets():
    cap = _vmem_capacity_bytes()
    # v5e/v6e (128 MiB) -> 96 MiB scoped limit; v7x (64 MiB) -> 48 MiB.
    vmem_limit = min((cap * 3) // 4, 100 * 1024 * 1024)
    # Streamed x/out blocks (2 in + 2 out pipeline buffers) use at most this much;
    # the rest of the limit covers constant operands (double-buffered) and in-kernel
    # temporaries (gate_full / final product).  A few-MiB block already saturates HBM.
    block_budget = min(vmem_limit // 2, 32 * 1024 * 1024)
    return vmem_limit, block_budget


def _pick_bt(B, row_bytes, sublane, block_budget):
    """Batch-tile size: grow to fill the block budget (4 pipeline buffers of
    `row_bytes` rows), align to the packed sublane tile, and make sure the grid
    has >= 2 parallel steps when the batch allows it (v7x: feed both TensorCores)."""
    bt = max(block_budget // (4 * max(row_bytes, 1)), sublane)
    bt = max((bt // sublane) * sublane, sublane)
    b_pad = _round_up(B, sublane)
    bt = min(bt, b_pad)
    if bt >= B and B > sublane:
        bt = _round_up(pl.cdiv(B, 2), sublane)
    return max(bt, sublane)


# ---------------------------------------------------------------------------
# Wrapper
# ---------------------------------------------------------------------------
def se_block(x, w1, b1, w2, b2):
    """x: (B, C, L); w1: (bneck, C); b1: (bneck,); w2: (C, bneck); b2: (C,)."""
    B, C, L = x.shape
    bneck = w1.shape[0]
    CL = C * L
    itemsize = x.dtype.itemsize

    # Pre-transpose 1x1-conv weights so the kernel does row-major matmuls.
    w1t = jnp.transpose(w1).astype(jnp.float32)      # (C, bneck)
    w2t = jnp.transpose(w2).astype(jnp.float32)      # (bneck, C)
    b1r = b1.reshape(1, bneck).astype(jnp.float32)   # (1, bneck)
    b2r = b2.reshape(1, C).astype(jnp.float32)       # (1, C)

    vmem_limit, block_budget = _vmem_budgets()
    sub = _sublane(x.dtype)
    Bt = _pick_bt(B, CL * itemsize, sub, block_budget)
    pad_b = (-B) % Bt
    Bp = B + pad_b

    cparams = pltpu.CompilerParams(
        dimension_semantics=("parallel",),
        vmem_limit_bytes=int(vmem_limit),
    )

    # Lane-dense (flattened) path when L would otherwise give lane-sparse stores and
    # the (small) auxiliary operands fit the VMEM headroom left outside block_budget.
    et_dtype = jnp.bfloat16 if x.dtype == jnp.bfloat16 else jnp.float32
    aux_bytes_flat = (CL * C * jnp.dtype(et_dtype).itemsize
                      + 4 * (2 * C * bneck + bneck + C))
    use_flat = (L % 128 != 0) and (2 * aux_bytes_flat <= vmem_limit - block_budget)

    if use_flat:
        x_in = x.reshape(B, CL)
        if pad_b:
            x_in = jnp.pad(x_in, ((0, pad_b), (0, 0)))

        # Et[c*L + l, c] = 1 : pooling indicator, also reused for the gate broadcast.
        et = jnp.repeat(jnp.eye(C, dtype=et_dtype), L, axis=0)          # (C*L, C)

        cost = pl.CostEstimate(
            flops=int(2 * Bp * CL * C          # pooling matmul
                      + 2 * Bp * C * bneck     # conv_1
                      + 2 * Bp * bneck * C     # conv_2
                      + 2 * Bp * CL * C        # gate-broadcast matmul
                      + 2 * Bp * CL),          # bias adds + final gating multiply
            transcendentals=int(Bp * C),       # sigmoid at (B, C)
            bytes_accessed=int(2 * Bp * CL * itemsize + aux_bytes_flat),
        )

        out_flat = pl.pallas_call(
            functools.partial(_se_kernel_flat, inv_len=1.0 / L),
            out_shape=jax.ShapeDtypeStruct((Bp, CL), x.dtype),
            grid_spec=pltpu.PrefetchScalarGridSpec(
                num_scalar_prefetch=0,
                grid=(Bp // Bt,),
                in_specs=[
                    pl.BlockSpec((Bt, CL), lambda b: (b, 0)),
                    pl.BlockSpec((CL, C), lambda b: (0, 0)),
                    pl.BlockSpec((C, bneck), lambda b: (0, 0)),
                    pl.BlockSpec((1, bneck), lambda b: (0, 0)),
                    pl.BlockSpec((bneck, C), lambda b: (0, 0)),
                    pl.BlockSpec((1, C), lambda b: (0, 0)),
                ],
                out_specs=pl.BlockSpec((Bt, CL), lambda b: (b, 0)),
            ),
            compiler_params=cparams,
            cost_estimate=cost,
        )(x_in, et, w1t, b1r, w2t, b2r)
        return out_flat.reshape(Bp, C, L)[:B]

    # 3-D path: L already lane-dense (multiple of 128) or aux operands too big.
    x_in = x
    if pad_b:
        x_in = jnp.pad(x_in, ((0, pad_b), (0, 0), (0, 0)))

    cost = pl.CostEstimate(
        flops=int(Bp * CL                      # pooling reduce
                  + 2 * Bp * C * bneck         # conv_1
                  + 2 * Bp * bneck * C         # conv_2
                  + 2 * Bp * CL),              # bias adds + final gating multiply
        transcendentals=int(Bp * C),
        bytes_accessed=int(2 * Bp * CL * itemsize + 4 * (2 * C * bneck + bneck + C)),
    )

    out = pl.pallas_call(
        _se_kernel_3d,
        out_shape=jax.ShapeDtypeStruct((Bp, C, L), x.dtype),
        grid_spec=pltpu.PrefetchScalarGridSpec(
            num_scalar_prefetch=0,
            grid=(Bp // Bt,),
            in_specs=[
                pl.BlockSpec((Bt, C, L), lambda b: (b, 0, 0)),
                pl.BlockSpec((C, bneck), lambda b: (0, 0)),
                pl.BlockSpec((1, bneck), lambda b: (0, 0)),
                pl.BlockSpec((bneck, C), lambda b: (0, 0)),
                pl.BlockSpec((1, C), lambda b: (0, 0)),
            ],
            out_specs=pl.BlockSpec((Bt, C, L), lambda b: (b, 0, 0)),
        ),
        compiler_params=cparams,
        cost_estimate=cost,
    )(x_in, w1t, b1r, w2t, b2r)
    return out[:B]


# ---------------------------------------------------------------------------
# Reference + test
# ---------------------------------------------------------------------------
def se_block_ref(x, w1, b1, w2, b2):
    """Pure-JAX reference mirroring the PyTorch forward."""
    pooled = jnp.mean(x.astype(jnp.float32), axis=2, keepdims=True)     # (B, C, 1)
    y = jnp.einsum("oc,bcl->bol", w1, pooled) + b1[None, :, None]
    y = jnp.maximum(y, 0.0)
    y = jnp.einsum("oc,bcl->bol", w2, y) + b2[None, :, None]
    y = jax.nn.sigmoid(y)
    return (x.astype(jnp.float32) * y).astype(x.dtype)


def _make_params(key, C, bneck):
    k1, k2, k3, k4 = jax.random.split(key, 4)
    bound1 = 1.0 / (C ** 0.5)
    w1 = jax.random.uniform(k1, (bneck, C), jnp.float32, -bound1, bound1)
    b1 = jax.random.uniform(k2, (bneck,), jnp.float32, -bound1, bound1)
    bound2 = 1.0 / (bneck ** 0.5)
    w2 = jax.random.uniform(k3, (C, bneck), jnp.float32, -bound2, bound2)
    b2 = jax.random.uniform(k4, (C,), jnp.float32, -bound2, bound2)
    return w1, b1, w2, b2


if __name__ == "__main__":
    key = jax.random.PRNGKey(0)
    kx1, kx2, kp1, kp2 = jax.random.split(key, 4)

    # Case 1: PyTorch defaults (bottleneck=128), small L -> flattened lane-dense path.
    B, C, L, bneck = 2, 4, 16, 128
    x = jax.random.normal(kx1, (B, C, L), dtype=jnp.float32)
    w1, b1, w2, b2 = _make_params(kp1, C, bneck)
    out = jax.block_until_ready(se_block(x, w1, b1, w2, b2))
    ref = se_block_ref(x, w1, b1, w2, b2)
    assert out.shape == (B, C, L)
    # Tolerance allows for TPU default matmul precision (bf16 passes) in the
    # matmul-based pooling / gate broadcast vs. the reference's exact-f32 jnp.mean.
    assert jnp.allclose(out, ref, atol=5e-3, rtol=5e-3), "flat path mismatch"

    # Case 2: L a multiple of 128 -> 3-D path (pooling is an exact f32 reduce).
    B2, C2, L2, bneck2 = 2, 4, 128, 32
    x2 = jax.random.normal(kx2, (B2, C2, L2), dtype=jnp.float32)
    w1b, b1b, w2b, b2b = _make_params(kp2, C2, bneck2)
    out2 = jax.block_until_ready(se_block(x2, w1b, b1b, w2b, b2b))
    ref2 = se_block_ref(x2, w1b, b1b, w2b, b2b)
    assert out2.shape == (B2, C2, L2)
    assert jnp.allclose(out2, ref2, atol=1e-5, rtol=1e-5), "3d path mismatch"

    print("KERNEL_OK")
</pallas_src>

<mosaic_0001>
module attributes {stable_mosaic.version = 11 : i64} {
  func.func @_se_kernel_flat(%arg0: i32, %arg1: memref<8x64xf32, #tpu.memory_space<vmem>>, %arg2: memref<64x4xf32, #tpu.memory_space<vmem>>, %arg3: memref<4x128xf32, #tpu.memory_space<vmem>>, %arg4: memref<1x128xf32, #tpu.memory_space<vmem>>, %arg5: memref<128x4xf32, #tpu.memory_space<vmem>>, %arg6: memref<1x4xf32, #tpu.memory_space<vmem>>, %arg7: memref<8x64xf32, #tpu.memory_space<vmem>>) attributes {dimension_semantics = [#tpu.dimension_semantics<parallel>], iteration_bounds = array<i64: 1>, scalar_prefetch = 0 : i64, scratch_operands = 0 : i64, tpu.core_type = #tpu.core_type<tc>, window_params = [{transform_indices = @transform_0, window_bounds = array<i64: 8, 64>}, {pipeline_mode = #tpu.pipeline_mode<synchronous>, transform_indices = @transform_1, window_bounds = array<i64: 64, 4>}, {pipeline_mode = #tpu.pipeline_mode<synchronous>, transform_indices = @transform_2, window_bounds = array<i64: 4, 128>}, {pipeline_mode = #tpu.pipeline_mode<synchronous>, transform_indices = @transform_3, window_bounds = array<i64: 1, 128>}, {pipeline_mode = #tpu.pipeline_mode<synchronous>, transform_indices = @transform_4, window_bounds = array<i64: 128, 4>}, {pipeline_mode = #tpu.pipeline_mode<synchronous>, transform_indices = @transform_5, window_bounds = array<i64: 1, 4>}, {transform_indices = @transform_6, window_bounds = array<i64: 8, 64>}]} {
    %c0 = arith.constant 0 : index
    %c0_0 = arith.constant 0 : index
    %0 = vector.load %arg1[%c0, %c0_0] : memref<8x64xf32, #tpu.memory_space<vmem>>, vector<8x64xf32>
    %c0_1 = arith.constant 0 : index
    %c0_2 = arith.constant 0 : index
    %1 = vector.load %arg2[%c0_1, %c0_2] : memref<64x4xf32, #tpu.memory_space<vmem>>, vector<64x4xf32>
    %cst = arith.constant dense<0.000000e+00> : vector<8x4xf32>
    %2 = tpu.matmul %0, %1, %cst {dimension_numbers = #tpu.dot_dimension_numbers<[1], [0], [0], [1], [0, 0, 1, 1], [], []>} : vector<8x64xf32>, vector<64x4xf32>, vector<8x4xf32> -> vector<8x4xf32>
    %cst_3 = arith.constant 6.250000e-02 : f32
    %3 = vector.broadcast %cst_3 : f32 to vector<8x4xf32>
    %4 = arith.mulf %2, %3 : vector<8x4xf32>
    %c0_4 = arith.constant 0 : index
    %c0_5 = arith.constant 0 : index
    %5 = vector.load %arg3[%c0_4, %c0_5] : memref<4x128xf32, #tpu.memory_space<vmem>>, vector<4x128xf32>
    %cst_6 = arith.constant dense<0.000000e+00> : vector<8x128xf32>
    %6 = tpu.matmul %4, %5, %cst_6 {dimension_numbers = #tpu.dot_dimension_numbers<[1], [0], [0], [1], [0, 0, 1, 1], [], []>} : vector<8x4xf32>, vector<4x128xf32>, vector<8x128xf32> -> vector<8x128xf32>
    %c0_7 = arith.constant 0 : index
    %c0_8 = arith.constant 0 : index
    %7 = vector.load %arg4[%c0_7, %c0_8] : memref<1x128xf32, #tpu.memory_space<vmem>>, vector<1x128xf32>
    %8 = vector.broadcast %7 : vector<1x128xf32> to vector<8x128xf32>
    %9 = arith.addf %6, %8 : vector<8x128xf32>
    %cst_9 = arith.constant 0.000000e+00 : f32
    %10 = vector.broadcast %cst_9 : f32 to vector<8x128xf32>
    %11 = arith.maximumf %9, %10 : vector<8x128xf32>
    %c0_10 = arith.constant 0 : index
    %c0_11 = arith.constant 0 : index
    %12 = vector.load %arg5[%c0_10, %c0_11] : memref<128x4xf32, #tpu.memory_space<vmem>>, vector<128x4xf32>
    %cst_12 = arith.constant dense<0.000000e+00> : vector<8x4xf32>
    %13 = tpu.matmul %11, %12, %cst_12 {dimension_numbers = #tpu.dot_dimension_numbers<[1], [0], [0], [1], [0, 0, 1, 1], [], []>} : vector<8x128xf32>, vector<128x4xf32>, vector<8x4xf32> -> vector<8x4xf32>
    %c0_13 = arith.constant 0 : index
    %c0_14 = arith.constant 0 : index
    %14 = vector.load %arg6[%c0_13, %c0_14] : memref<1x4xf32, #tpu.memory_space<vmem>>, vector<1x4xf32>
    %15 = vector.broadcast %14 : vector<1x4xf32> to vector<8x4xf32>
    %16 = arith.addf %13, %15 : vector<8x4xf32>
    %17 = arith.negf %16 : vector<8x4xf32>
    %18 = math.exp %17 : vector<8x4xf32>
    %cst_15 = arith.constant 1.000000e+00 : f32
    %19 = vector.broadcast %cst_15 : f32 to vector<8x4xf32>
    %20 = arith.addf %19, %18 : vector<8x4xf32>
    %21 = arith.divf %19, %20 : vector<8x4xf32>
    %c0_16 = arith.constant 0 : index
    %c0_17 = arith.constant 0 : index
    %22 = vector.load %arg2[%c0_16, %c0_17] : memref<64x4xf32, #tpu.memory_space<vmem>>, vector<64x4xf32>
    %cst_18 = arith.constant dense<0.000000e+00> : vector<8x64xf32>
    %23 = tpu.matmul %21, %22, %cst_18 {dimension_numbers = #tpu.dot_dimension_numbers<[1], [1], [0], [0], [0, 0, 1, 0], [], []>} : vector<8x4xf32>, vector<64x4xf32>, vector<8x64xf32> -> vector<8x64xf32>
    %c0_19 = arith.constant 0 : index
    %c0_20 = arith.constant 0 : index
    %24 = vector.load %arg1[%c0_19, %c0_20] : memref<8x64xf32, #tpu.memory_space<vmem>>, vector<8x64xf32>
    %25 = arith.mulf %24, %23 : vector<8x64xf32>
    %c0_21 = arith.constant 0 : index
    %c0_22 = arith.constant 0 : index
    %26 = vector.load %arg7[%c0_21, %c0_22] : memref<8x64xf32, #tpu.memory_space<vmem>>, vector<8x64xf32>
    tpu.vector_store %arg7[%c0_21, %c0_22], %25 {strides = array<i32>} : memref<8x64xf32, #tpu.memory_space<vmem>>, vector<8x64xf32>,
    return
  }
  func.func @transform_0(%arg0: i32) -> (i32, i32) {
    %c0_i32 = arith.constant 0 : i32
    %c0_i32_0 = arith.constant 0 : i32
    return %arg0, %c0_i32 : i32, i32
  }
  func.func @transform_1(%arg0: i32) -> (i32, i32) {
    %c0_i32 = arith.constant 0 : i32
    %c0_i32_0 = arith.constant 0 : i32
    %c0_i32_1 = arith.constant 0 : i32
    return %c0_i32, %c0_i32_0 : i32, i32
  }
  func.func @transform_2(%arg0: i32) -> (i32, i32) {
    %c0_i32 = arith.constant 0 : i32
    %c0_i32_0 = arith.constant 0 : i32
    %c0_i32_1 = arith.constant 0 : i32
    return %c0_i32, %c0_i32_0 : i32, i32
  }
  func.func @transform_3(%arg0: i32) -> (i32, i32) {
    %c0_i32 = arith.constant 0 : i32
    %c0_i32_0 = arith.constant 0 : i32
    %c0_i32_1 = arith.constant 0 : i32
    return %c0_i32, %c0_i32_0 : i32, i32
  }
  func.func @transform_4(%arg0: i32) -> (i32, i32) {
    %c0_i32 = arith.constant 0 : i32
    %c0_i32_0 = arith.constant 0 : i32
    %c0_i32_1 = arith.constant 0 : i32
    return %c0_i32, %c0_i32_0 : i32, i32
  }
  func.func @transform_5(%arg0: i32) -> (i32, i32) {
    %c0_i32 = arith.constant 0 : i32
    %c0_i32_0 = arith.constant 0 : i32
    %c0_i32_1 = arith.constant 0 : i32
    return %c0_i32, %c0_i32_0 : i32, i32
  }
  func.func @transform_6(%arg0: i32) -> (i32, i32) {
    %c0_i32 = arith.constant 0 : i32
    %c0_i32_0 = arith.constant 0 : i32
    return %arg0, %c0_i32 : i32, i32
  }
}

</mosaic_0001>

<llo_original>
// kernel: tpu_custom_call.1
$region0: #{tpu_custom_call.1}
  #allocation0 [shape = 'u32[]', space=smem, size = 0x4, offset = 0x4, fixed_abs, tag = 'smem constant byte address 0x4 - core index']
  #allocation1 [shape = 'u32[144,128]{1,0:T(1,128)}', space=vmem, size = 0x12000, scoped, tag = 'internal scratch']
  %s0 = inlined_call_operand.vmem [shape: f32[8,64], index: 0, kind: input, shape index: {}]
  %s1 = inlined_call_operand.vmem [shape: f32[64,4], index: 1, kind: input, shape index: {}]
  %s2 = inlined_call_operand.vmem [shape: f32[4,128], index: 2, kind: input, shape index: {}]
  %s3 = inlined_call_operand.vmem [shape: f32[1,128], index: 3, kind: input, shape index: {}]
  %s4 = inlined_call_operand.vmem [shape: f32[128,4], index: 4, kind: input, shape index: {}]
  %s5 = inlined_call_operand.vmem [shape: f32[1,4], index: 5, kind: input, shape index: {}]
  %s6 = inlined_call_operand.hbm [shape: f32[8,64], index: 6, kind: output, shape index: {}]
  %s7 = sld [smem:[#allocation0]]
  $region34: #{tpu_custom_call.1} parent=0
    _
  %s9 = ssub.s32 1, %s7
  %s10 = scalar_select 0, %s9, %s7
  $region1: #{tpu_custom_call.1} parent=0
    #allocation2 [shape = 'u8[4096]{0}', space=vmem, size = 0x1000, scoped, tag = 'output window, operand 0, single buffered']
    #allocation3 [shape = 's32[1]{0}', space=sflag, size = 0x4, scoped, tag = 'scoped memory for tpu_custom_call.1']
    %11 = vsyncpa [#allocation3], 0
    // Predicated region
    $region2: #{tpu_custom_call.1} parent=1 // pred_check
      _
    $region3: #{tpu_custom_call.1} parent=1 // pred_check_branch
      %13 = sbr.rel (0) target = $region5
    $region4: #{tpu_custom_call.1} parent=1 // pred_region
      _
    $region5: #{tpu_custom_call.1} parent=1 // pred_fallthru
      _
    // Predicated region
    $region6: #{tpu_custom_call.1} parent=1 // pred_check
      _
    $region7: #{tpu_custom_call.1} parent=1 // pred_check_branch
      %15 = sbr.rel (0) target = $region9
    $region8: #{tpu_custom_call.1} parent=1 // pred_region
      _
    $region9: #{tpu_custom_call.1} parent=1 // pred_fallthru
      _
    // Predicated region
    $region10: #{tpu_custom_call.1} parent=1 // pred_check
      _
    $region11: #{tpu_custom_call.1} parent=1 // pred_check_branch
      %17 = sbr.rel (0) target = $region13
    $region12: #{tpu_custom_call.1} parent=1 // pred_region
      _
    $region13: #{tpu_custom_call.1} parent=1 // pred_fallthru
      _
    // Predicated region
    $region14: #{tpu_custom_call.1} parent=1 // pred_check
      _
    $region15: #{tpu_custom_call.1} parent=1 // pred_check_branch
      %19 = sbr.rel (0) target = $region17
    $region16: #{tpu_custom_call.1} parent=1 // pred_region
      _
    $region17: #{tpu_custom_call.1} parent=1 // pred_fallthru
      _
    // Predicated region
    $region18: #{tpu_custom_call.1} parent=1 // pred_check
      _
    $region19: #{tpu_custom_call.1} parent=1 // pred_check_branch
      %21 = sbr.rel (0) target = $region21
    $region20: #{tpu_custom_call.1} parent=1 // pred_region
      _
    $region21: #{tpu_custom_call.1} parent=1 // pred_fallthru
      _
    // Predicated region
    $region22: #{tpu_custom_call.1} parent=1 // pred_check
      _
    $region23: #{tpu_custom_call.1} parent=1 // pred_check_branch
      %23 = sbr.rel (0) target = $region25
    $region24: #{tpu_custom_call.1} parent=1 // pred_region
      _
    $region25: #{tpu_custom_call.1} parent=1 // pred_fallthru
      _
    %v24 = vld [vmem:[%s0] sm:$0xff]
    %v25 = vld [vmem:[%s1] sm:$0xff]
    %v26 = vld [vmem:[%s1 + $0x8] sm:$0xff]
    %v27 = vld [vmem:[%s1 + $0x10] sm:$0xff]
    %v28 = vld [vmem:[%s1 + $0x18] sm:$0xff]
    %v29 = vld [vmem:[%s1 + $0x20] sm:$0xff]
    %v30 = vld [vmem:[%s1 + $0x28] sm:$0xff]
    %v31 = vld [vmem:[%s1 + $0x30] sm:$0xff]
    %v32 = vld [vmem:[%s1 + $0x38] sm:$0xff]
    %vm33 = vcmask 523264
    %v35 = vsel %vm33, %v24, 0
    %37 = vmatprep.subr.mxu0 0.0
    %38 = vmatpush1.msra.mxu0 %v25
    %39 = vmatprep.subr.mxu0 0.0
    %40 = vmatpush1.msra.mxu0 %v26
    %41 = vmatprep.subr.mxu0 0.0
    %42 = vmatpush1.msra.mxu0 %v27
    %43 = vmatprep.subr.mxu0 0.0
    %44 = vmatpush1.msra.mxu0 %v28
    %45 = vmatprep.subr.mxu0 0.0
    %46 = vmatpush1.msra.mxu0 %v29
    %47 = vmatprep.subr.mxu0 0.0
    %48 = vmatpush1.msra.mxu0 %v30
    %49 = vmatprep.subr.mxu0 0.0
    %50 = vmatpush1.msra.mxu0 %v31
    %51 = vmatprep.subr.mxu0 0.0
    %52 = vmatpush1.msra.mxu0 %v32
    %53 = vmatprep.subr.mxu0 0.0
    %54 = vmatpush1.msra.mxu0 0.0
    %55 = vmatprep.subr.mxu0 0.0
    %56 = vmatpush1.msra.mxu0 0.0
    %57 = vmatprep.subr.mxu0 0.0
    %58 = vmatpush1.msra.mxu0 0.0
    %59 = vmatprep.subr.mxu0 0.0
    %60 = vmatpush1.msra.mxu0 0.0
    %61 = vmatprep.subr.mxu0 0.0
    %62 = vmatpush1.msra.mxu0 0.0
    %63 = vmatprep.subr.mxu0 0.0
    %64 = vmatpush1.msra.mxu0 0.0
    %65 = vmatprep.subr.mxu0 0.0
    %66 = vmatpush1.msra.mxu0 0.0
    %67 = vmatprep.subr.mxu0 0.0
    %68 = vmatpush1.msra.mxu0 0.0
    %69 = vmatprep.subr.mxu0 0.0
    %70 = vmatpush1.msra.mxu0 0.0
    %71 = vmatprep.subr.mxu0 0.0
    %72 = vmatpush1.msra.mxu0 0.0
    %73 = vmatprep.subr.mxu0 0.0
    %74 = vmatpush1.msra.mxu0 0.0
    %75 = vmatprep.subr.mxu0 0.0
    %76 = vmatpush1.msra.mxu0 0.0
    %77 = vmatprep.subr.mxu0 0.0
    %78 = vmatpush1.msra.mxu0 0.0
    %79 = vmatprep.subr.mxu0 0.0
    %80 = vmatpush1.msra.mxu0 0.0
    %81 = vmatprep.subr.mxu0 0.0
    %82 = vmatpush1.msra.mxu0 0.0
    %83 = vmatprep.subr.mxu0 0.0
    %84 = vmatpush1.msra.mxu0 0.0
    %85 = vmatprep.subr.mxu0 0.0
    %86 = vmatpush1.msra.mxu0 0.0
    %87 = vmatprep.subr.mxu0 0.0
    %88 = vmatpush1.msra.mxu0 0.0
    %89 = vmatprep.subr.mxu0 0.0
    %90 = vmatpush1.msra.mxu0 0.0
    %91 = vmatprep.subr.mxu0 0.0
    %92 = vmatpush1.msra.mxu0 0.0
    %93 = vmatprep.subr.mxu0 0.0
    %94 = vmatpush1.msra.mxu0 0.0
    %95 = vmatprep.subr.mxu0 0.0
    %96 = vmatpush1.msra.mxu0 0.0
    %97 = vmatprep.subr.mxu0 0.0
    %98 = vmatpush1.msra.mxu0 0.0
    %99 = vmatprep.subr.mxu0 0.0
    %100 = vmatpush1.msra.mxu0 0.0
    %101 = vmatprep.mubr.f32.mxu0 0.0
    %102 = vmatmul.mubr.f32.gmra.mrb[0].mxu0 %v35
    %v103 = vpop.f32.mrb[0].mxu0
    %v104 = vadd.f32 0.0, %v103
    %v105 = vpop.f32.mrb[0].mxu0
    %106 = vdwg.mxu0
    %v107 = vmul.f32 %v104, 0.0625
    %v108 = vld [vmem:[%s2] sm:$0xf]
    %v109 = vld [vmem:[%s3] sm:$0x1]
    %v111 = vlaneseq
    %v112 = vshrl.u32 %v111, 7
    %v113 = vsub.s32 0, %v112
    %v114 = vrot.slane %v109, %v113
    %vm116 = vcmask 31744
    %v118 = vsel %vm116, %v107, 0
    %vm120 = vcmask 1043456
    %v122 = vsel %vm120, %v108, 0
    %124 = vmatprep.subr.mxu0 0.0
    %125 = vmatpush1.msra.mxu0 %v122
    %126 = vmatprep.subr.mxu0 0.0
    %127 = vmatpush1.msra.mxu0 0.0
    %128 = vmatprep.subr.mxu0 0.0
    %129 = vmatpush1.msra.mxu0 0.0
    %130 = vmatprep.subr.mxu0 0.0
    %131 = vmatpush1.msra.mxu0 0.0
    %132 = vmatprep.subr.mxu0 0.0
    %133 = vmatpush1.msra.mxu0 0.0
    %134 = vmatprep.subr.mxu0 0.0
    %135 = vmatpush1.msra.mxu0 0.0
    %136 = vmatprep.subr.mxu0 0.0
    %137 = vmatpush1.msra.mxu0 0.0
    %138 = vmatprep.subr.mxu0 0.0
    %139 = vmatpush1.msra.mxu0 0.0
    %140 = vmatprep.subr.mxu0 0.0
    %141 = vmatpush1.msra.mxu0 0.0
    %142 = vmatprep.subr.mxu0 0.0
    %143 = vmatpush1.msra.mxu0 0.0
    %144 = vmatprep.subr.mxu0 0.0
    %145 = vmatpush1.msra.mxu0 0.0
    %146 = vmatprep.subr.mxu0 0.0
    %147 = vmatpush1.msra.mxu0 0.0
    %148 = vmatprep.subr.mxu0 0.0
    %149 = vmatpush1.msra.mxu0 0.0
    %150 = vmatprep.subr.mxu0 0.0
    %151 = vmatpush1.msra.mxu0 0.0
    %152 = vmatprep.subr.mxu0 0.0
    %153 = vmatpush1.msra.mxu0 0.0
    %154 = vmatprep.subr.mxu0 0.0
    %155 = vmatpush1.msra.mxu0 0.0
    %156 = vmatprep.subr.mxu0 0.0
    %157 = vmatpush1.msra.mxu0 0.0
    %158 = vmatprep.subr.mxu0 0.0
    %159 = vmatpush1.msra.mxu0 0.0
    %160 = vmatprep.subr.mxu0 0.0
    %161 = vmatpush1.msra.mxu0 0.0
    %162 = vmatprep.subr.mxu0 0.0
    %163 = vmatpush1.msra.mxu0 0.0
    %164 = vmatprep.subr.mxu0 0.0
    %165 = vmatpush1.msra.mxu0 0.0
    %166 = vmatprep.subr.mxu0 0.0
    %167 = vmatpush1.msra.mxu0 0.0
    %168 = vmatprep.subr.mxu0 0.0
    %169 = vmatpush1.msra.mxu0 0.0
    %170 = vmatprep.subr.mxu0 0.0
    %171 = vmatpush1.msra.mxu0 0.0
    %172 = vmatprep.subr.mxu0 0.0
    %173 = vmatpush1.msra.mxu0 0.0
    %174 = vmatprep.subr.mxu0 0.0
    %175 = vmatpush1.msra.mxu0 0.0
    %176 = vmatprep.subr.mxu0 0.0
    %177 = vmatpush1.msra.mxu0 0.0
    %178 = vmatprep.subr.mxu0 0.0
    %179 = vmatpush1.msra.mxu0 0.0
    %180 = vmatprep.subr.mxu0 0.0
    %181 = vmatpush1.msra.mxu0 0.0
    %182 = vmatprep.subr.mxu0 0.0
    %183 = vmatpush1.msra.mxu0 0.0
    %184 = vmatprep.subr.mxu0 0.0
    %185 = vmatpush1.msra.mxu0 0.0
    %186 = vmatprep.subr.mxu0 0.0
    %187 = vmatpush1.msra.mxu0 0.0
    %188 = vmatprep.mubr.f32.mxu0 0.0
    %189 = vmatmul.mubr.f32.gmra.mrb[0].mxu0 %v118
    %v190 = vpop.f32.mrb[0].mxu0
    %v191 = vadd.f32 %v114, %v190
    %v192 = vpop.f32.mrb[0].mxu0
    %193 = vdwg.mxu0
    %v194 = vmax.f32 %v191, 0.0
    %v195 = vld [vmem:[%s4] sm:$0xff]
    %v196 = vld [vmem:[%s4 + $0x8] sm:$0xff]
    %v197 = vld [vmem:[%s4 + $0x10] sm:$0xff]
    %v198 = vld [vmem:[%s4 + $0x18] sm:$0xff]
    %v199 = vld [vmem:[%s4 + $0x20] sm:$0xff]
    %v200 = vld [vmem:[%s4 + $0x28] sm:$0xff]
    %v201 = vld [vmem:[%s4 + $0x30] sm:$0xff]
    %v202 = vld [vmem:[%s4 + $0x38] sm:$0xff]
    %v203 = vld [vmem:[%s4 + $0x40] sm:$0xff]
    %v204 = vld [vmem:[%s4 + $0x48] sm:$0xff]
    %v205 = vld [vmem:[%s4 + $0x50] sm:$0xff]
    %v206 = vld [vmem:[%s4 + $0x58] sm:$0xff]
    %v207 = vld [vmem:[%s4 + $0x60] sm:$0xff]
    %v208 = vld [vmem:[%s4 + $0x68] sm:$0xff]
    %v209 = vld [vmem:[%s4 + $0x70] sm:$0xff]
    %v210 = vld [vmem:[%s4 + $0x78] sm:$0xff]
    %v211 = vld [vmem:[%s5] sm:$0x1]
    %v213 = vlaneseq
    %v214 = vshrl.u32 %v213, 7
    %v215 = vsub.s32 0, %v214
    %v216 = vrot.slane %v211, %v215
    %218 = vmatprep.subr.mxu0 0.0
    %219 = vmatpush1.msra.mxu0 %v195
    %220 = vmatprep.subr.mxu0 0.0
    %221 = vmatpush1.msra.mxu0 %v196
    %222 = vmatprep.subr.mxu0 0.0
    %223 = vmatpush1.msra.mxu0 %v197
    %224 = vmatprep.subr.mxu0 0.0
    %225 = vmatpush1.msra.mxu0 %v198
    %226 = vmatprep.subr.mxu0 0.0
    %227 = vmatpush1.msra.mxu0 %v199
    %228 = vmatprep.subr.mxu0 0.0
    %229 = vmatpush1.msra.mxu0 %v200
    %230 = vmatprep.subr.mxu0 0.0
    %231 = vmatpush1.msra.mxu0 %v201
    %232 = vmatprep.subr.mxu0 0.0
    %233 = vmatpush1.msra.mxu0 %v202
    %234 = vmatprep.subr.mxu0 0.0
    %235 = vmatpush1.msra.mxu0 %v203
    %236 = vmatprep.subr.mxu0 0.0
    %237 = vmatpush1.msra.mxu0 %v204
    %238 = vmatprep.subr.mxu0 0.0
    %239 = vmatpush1.msra.mxu0 %v205
    %240 = vmatprep.subr.mxu0 0.0
    %241 = vmatpush1.msra.mxu0 %v206
    %242 = vmatprep.subr.mxu0 0.0
    %243 = vmatpush1.msra.mxu0 %v207
    %244 = vmatprep.subr.mxu0 0.0
    %245 = vmatpush1.msra.mxu0 %v208
    %246 = vmatprep.subr.mxu0 0.0
    %247 = vmatpush1.msra.mxu0 %v209
    %248 = vmatprep.subr.mxu0 0.0
    %249 = vmatpush1.msra.mxu0 %v210
    %250 = vmatprep.subr.mxu0 0.0
    %251 = vmatpush1.msra.mxu0 0.0
    %252 = vmatprep.subr.mxu0 0.0
    %253 = vmatpush1.msra.mxu0 0.0
    %254 = vmatprep.subr.mxu0 0.0
    %255 = vmatpush1.msra.mxu0 0.0
    %256 = vmatprep.subr.mxu0 0.0
    %257 = vmatpush1.msra.mxu0 0.0
    %258 = vmatprep.subr.mxu0 0.0
    %259 = vmatpush1.msra.mxu0 0.0
    %260 = vmatprep.subr.mxu0 0.0
    %261 = vmatpush1.msra.mxu0 0.0
    %262 = vmatprep.subr.mxu0 0.0
    %263 = vmatpush1.msra.mxu0 0.0
    %264 = vmatprep.subr.mxu0 0.0
    %265 = vmatpush1.msra.mxu0 0.0
    %266 = vmatprep.subr.mxu0 0.0
    %267 = vmatpush1.msra.mxu0 0.0
    %268 = vmatprep.subr.mxu0 0.0
    %269 = vmatpush1.msra.mxu0 0.0
    %270 = vmatprep.subr.mxu0 0.0
    %271 = vmatpush1.msra.mxu0 0.0
    %272 = vmatprep.subr.mxu0 0.0
    %273 = vmatpush1.msra.mxu0 0.0
    %274 = vmatprep.subr.mxu0 0.0
    %275 = vmatpush1.msra.mxu0 0.0
    %276 = vmatprep.subr.mxu0 0.0
    %277 = vmatpush1.msra.mxu0 0.0
    %278 = vmatprep.subr.mxu0 0.0
    %279 = vmatpush1.msra.mxu0 0.0
    %280 = vmatprep.subr.mxu0 0.0
    %281 = vmatpush1.msra.mxu0 0.0
    %282 = vmatprep.mubr.f32.mxu0 0.0
    %283 = vmatmul.mubr.f32.gmra.mrb[0].mxu0 %v194
    %v284 = vpop.f32.mrb[0].mxu0
    %v285 = vadd.f32 %v216, %v284
    %v286 = vpop.f32.mrb[0].mxu0
    %287 = vdwg.mxu0
    %v288 = vxor.u32 %v285, 2147483648
    %v289 = vmul.f32 %v288, 1.442695
    %v290 = vpow.pop %v289
    %v291 = vadd.f32 %v290, 1.0
    %v292 = vrcp.pop %v291
    %v293 = vmul.f32 1.0, %v292
    %v295 = vsel %vm116, %v293, 0
    %v298 = vsel %vm116, %v25, 0
    %v301 = vsel %vm116, %v26, 0
    %v304 = vsel %vm116, %v27, 0
    %v307 = vsel %vm116, %v28, 0
    %v310 = vsel %vm116, %v29, 0
    %v313 = vsel %vm116, %v30, 0
    %v316 = vsel %vm116, %v31, 0
    %v319 = vsel %vm116, %v32, 0
    %321 = vmatprep.subr.mxu0 0.0
    %322 = vmatpush1.xpose.msra.mxu0 %v298
    %323 = vmatprep.subr.mxu0 0.0
    %324 = vmatpush1.xpose.msra.mxu0 %v301
    %325 = vmatprep.subr.mxu0 0.0
    %326 = vmatpush1.xpose.msra.mxu0 %v304
    %327 = vmatprep.subr.mxu0 0.0
    %328 = vmatpush1.xpose.msra.mxu0 %v307
    %329 = vmatprep.subr.mxu0 0.0
    %330 = vmatpush1.xpose.msra.mxu0 %v310
    %331 = vmatprep.subr.mxu0 0.0
    %332 = vmatpush1.xpose.msra.mxu0 %v313
    %333 = vmatprep.subr.mxu0 0.0
    %334 = vmatpush1.xpose.msra.mxu0 %v316
    %335 = vmatprep.subr.mxu0 0.0
    %336 = vmatpush1.xpose.msra.mxu0 %v319
    %337 = vmatprep.subr.mxu0 0.0
    %338 = vmatpush1.xpose.msra.mxu0 0.0
    %339 = vmatprep.subr.mxu0 0.0
    %340 = vmatpush1.xpose.msra.mxu0 0.0
    %341 = vmatprep.subr.mxu0 0.0
    %342 = vmatpush1.xpose.msra.mxu0 0.0
    %343 = vmatprep.subr.mxu0 0.0
    %344 = vmatpush1.xpose.msra.mxu0 0.0
    %345 = vmatprep.subr.mxu0 0.0
    %346 = vmatpush1.xpose.msra.mxu0 0.0
    %347 = vmatprep.subr.mxu0 0.0
    %348 = vmatpush1.xpose.msra.mxu0 0.0
    %349 = vmatprep.subr.mxu0 0.0
    %350 = vmatpush1.xpose.msra.mxu0 0.0
    %351 = vmatprep.subr.mxu0 0.0
    %352 = vmatpush1.xpose.msra.mxu0 0.0
    %353 = vmatprep.subr.mxu0 0.0
    %354 = vmatpush1.xpose.msra.mxu0 0.0
    %355 = vmatprep.subr.mxu0 0.0
    %356 = vmatpush1.xpose.msra.mxu0 0.0
    %357 = vmatprep.subr.mxu0 0.0
    %358 = vmatpush1.xpose.msra.mxu0 0.0
    %359 = vmatprep.subr.mxu0 0.0
    %360 = vmatpush1.xpose.msra.mxu0 0.0
    %361 = vmatprep.subr.mxu0 0.0
    %362 = vmatpush1.xpose.msra.mxu0 0.0
    %363 = vmatprep.subr.mxu0 0.0
    %364 = vmatpush1.xpose.msra.mxu0 0.0
    %365 = vmatprep.subr.mxu0 0.0
    %366 = vmatpush1.xpose.msra.mxu0 0.0
    %367 = vmatprep.subr.mxu0 0.0
    %368 = vmatpush1.xpose.msra.mxu0 0.0
    %369 = vmatprep.subr.mxu0 0.0
    %370 = vmatpush1.xpose.msra.mxu0 0.0
    %371 = vmatprep.subr.mxu0 0.0
    %372 = vmatpush1.xpose.msra.mxu0 0.0
    %373 = vmatprep.subr.mxu0 0.0
    %374 = vmatpush1.xpose.msra.mxu0 0.0
    %375 = vmatprep.subr.mxu0 0.0
    %376 = vmatpush1.xpose.msra.mxu0 0.0
    %377 = vmatprep.subr.mxu0 0.0
    %378 = vmatpush1.xpose.msra.mxu0 0.0
    %379 = vmatprep.subr.mxu0 0.0
    %380 = vmatpush1.xpose.msra.mxu0 0.0
    %381 = vmatprep.subr.mxu0 0.0
    %382 = vmatpush1.xpose.msra.mxu0 0.0
    %383 = vmatprep.subr.mxu0 0.0
    %384 = vmatpush1.xpose.msra.mxu0 0.0
    %385 = vmatprep.mubr.f32.mxu0 0.0
    %386 = vmatmul.mubr.f32.gmra.mrb[0].mxu0 %v295
    %v387 = vpop.f32.mrb[0].mxu0
    %v388 = vadd.f32 0.0, %v387
    %v389 = vpop.f32.mrb[0].mxu0
    %390 = vdwg.mxu0
    %v391 = vmul.f32 %v24, %v388
    %392 = vst.msk [vmem:[#allocation2] sm:$0xff] %vm33, %v391
    // Predicated region
    $region26: #{tpu_custom_call.1} parent=1 // pred_check
      _
    $region27: #{tpu_custom_call.1} parent=1 // pred_check_branch
      %394 = sbr.rel (0) target = $region29
    $region28: #{tpu_custom_call.1} parent=1 // pred_region
      %s396 = ssub.s32 128, 128
      %397 = vsyncadd [#allocation3], %s396
      %s399 = sshll.u32 [#allocation2], 4
      %s400 = int_to_ptr.vmem [resolvable:$true] %s399
      %402 = dma.vmem_to_hbm [thread:$0]  %s400, 128, %s6, [#allocation3]
    $region29: #{tpu_custom_call.1} parent=1 // pred_fallthru
      _
    // Predicated region
    $region30: #{tpu_custom_call.1} parent=1 // pred_check
      _
    $region31: #{tpu_custom_call.1} parent=1 // pred_check_branch
      %404 = sbr.rel (0) target = $region33
    $region32: #{tpu_custom_call.1} parent=1 // pred_region
      %405 = dma.done [#allocation3], 128
    $region33: #{tpu_custom_call.1} parent=1 // pred_fallthru
      _
    %406 = vsyncpa [#allocation3], 1

</llo_original>
